<compile_context>
chip_gen: v7x
topology: tpu7x:2x2x1
jax: 0.10.0
libtpu: 0.0.40
codegen_flags: <defaults>
</compile_context>

<pallas_src>
import functools

import jax
import jax.numpy as jnp
from jax.experimental import pallas as pl
from jax.experimental.pallas import tpu as pltpu


def _round_up(x, m):
    return ((x + m - 1) // m) * m


def _dqn_loss_kernel(s_ref, ns_ref, oh_ref, rd_ref,
                     w1_ref, b1_ref, w2_ref, b2_ref, o_ref, *, gamma):
    two_a = oh_ref.shape[1]
    a = two_a // 2

    w1 = w1_ref[...]          # [D, 2H] bf16 (1/255 folded in)
    b1 = b1_ref[...]          # [1, 2H] f32
    w2 = w2_ref[...]          # [2H, 2A] bf16 block-diag(w2q, w2t)
    b2 = b2_ref[...]          # [1, 2A] f32

    # uint8 -> f32 -> bf16 is exact for 0..255; the /255 is folded into w1.
    s = s_ref[...].astype(jnp.float32).astype(jnp.bfloat16)          # [tb, D]
    ns = ns_ref[...].astype(jnp.float32).astype(jnp.bfloat16)        # [tb, D]

    # Online net on states: q_s[:, :A] = q_network(states).
    h_s = jnp.maximum(jnp.dot(s, w1, preferred_element_type=jnp.float32) + b1, 0.0)
    q_s = jnp.dot(h_s.astype(jnp.bfloat16), w2,
                  preferred_element_type=jnp.float32) + b2           # [tb, 2A]

    # Target net on next_states: q_t[:, A:] = q_target(next_states).
    h_t = jnp.maximum(jnp.dot(ns, w1, preferred_element_type=jnp.float32) + b1, 0.0)
    q_t = jnp.dot(h_t.astype(jnp.bfloat16), w2,
                  preferred_element_type=jnp.float32) + b2           # [tb, 2A]

    # gather(1, actions) via one-hot (nonzero only in the first A lanes).
    pred = jnp.sum(q_s * oh_ref[...], axis=1, keepdims=True)         # [tb, 1]

    # max_a Q_target(s') over the target-net lanes only.
    lane = jax.lax.broadcasted_iota(jnp.int32, q_t.shape, 1)
    qt_max = jnp.max(jnp.where(lane >= a, q_t, -1e30), axis=1, keepdims=True)

    rd = rd_ref[...]                                                  # [tb, 2] f32
    rew = rd[:, 0:1]
    done = rd[:, 1:2]
    target = rew + jnp.float32(gamma) * qt_max * (1.0 - done)

    # SmoothL1 (beta=1).  Padded rows have pred==target==0 -> contribute 0.
    d = pred - target
    ad = jnp.abs(d)
    elem = jnp.where(ad < 1.0, 0.5 * d * d, ad - 0.5)
    part = jnp.sum(elem)

    # Lane-dense (8,128) full-block store; the partial sum sits at [0, 0].
    r_i = jax.lax.broadcasted_iota(jnp.int32, (8, 128), 0)
    c_i = jax.lax.broadcasted_iota(jnp.int32, (8, 128), 1)
    o_ref[0] = jnp.where((r_i == 0) & (c_i == 0), part, 0.0)


def dqn_loss(states_u8, next_states_u8, actions_idx, rewards, done, params,
             gamma=0.9, batch_tile=512):
    """states/next_states: uint8 [B, C, H, W]; actions_idx: int [B]."""
    B = states_u8.shape[0]
    s = states_u8.reshape(B, -1)                       # stays uint8
    ns = next_states_u8.reshape(B, -1)
    D = s.shape[1]
    HID = params["w1q"].shape[1]
    A = params["w2q"].shape[1]

    # Batch tile: bounded by a ~8 MiB budget for the double-buffered uint8
    # s/ns blocks, rounded to the uint8 sublane packing tile (32).
    tb_budget = max(32, (((8 << 20) // (4 * D)) // 32) * 32)
    TB = min(batch_tile, tb_budget, _round_up(B, 32))
    num_tiles = pl.cdiv(B, TB)
    B_pad = num_tiles * TB
    pad = B_pad - B

    # Pad the batch so padded rows contribute exactly 0 loss:
    #   obs = 0, onehot = 0 (-> pred = 0), reward = 0, done = 1 (-> target = 0).
    if pad:
        s = jnp.pad(s, ((0, pad), (0, 0)))
        ns = jnp.pad(ns, ((0, pad), (0, 0)))
    onehot = jax.nn.one_hot(actions_idx, 2 * A, dtype=jnp.float32)    # [B, 2A]
    if pad:
        onehot = jnp.pad(onehot, ((0, pad), (0, 0)))
    rew_p = jnp.pad(rewards.astype(jnp.float32), (0, pad))
    done_p = jnp.pad(done.astype(jnp.float32), (0, pad), constant_values=1.0)
    rewdone = jnp.stack([rew_p, done_p], axis=1)                      # [B_pad, 2]

    # Fused weights (built once per call; in training these would be cached).
    inv255 = jnp.float32(1.0 / 255.0)
    w1 = (jnp.concatenate([params["w1q"], params["w1t"]], axis=1) * inv255
          ).astype(jnp.bfloat16)                                      # [D, 2H]
    b1 = jnp.concatenate([params["b1q"], params["b1t"]], axis=1).astype(jnp.float32)
    zhA = jnp.zeros((HID, A), jnp.float32)
    w2 = jnp.concatenate(
        [jnp.concatenate([params["w2q"], zhA], axis=1),
         jnp.concatenate([zhA, params["w2t"]], axis=1)], axis=0
    ).astype(jnp.bfloat16)                                            # [2H, 2A]
    b2 = jnp.concatenate([params["b2q"], params["b2t"]], axis=1).astype(jnp.float32)

    kernel = functools.partial(_dqn_loss_kernel, gamma=gamma)
    out = pl.pallas_call(
        kernel,
        grid=(num_tiles,),
        in_specs=[
            pl.BlockSpec((TB, D), lambda i: (i, 0)),              # states (uint8)
            pl.BlockSpec((TB, D), lambda i: (i, 0)),              # next_states (uint8)
            pl.BlockSpec((TB, 2 * A), lambda i: (i, 0)),          # action one-hot
            pl.BlockSpec((TB, 2), lambda i: (i, 0)),              # reward / done
            pl.BlockSpec((D, 2 * HID), lambda i: (0, 0)),         # W1 (resident)
            pl.BlockSpec((1, 2 * HID), lambda i: (0, 0)),         # b1
            pl.BlockSpec((2 * HID, 2 * A), lambda i: (0, 0)),     # W2 (resident)
            pl.BlockSpec((1, 2 * A), lambda i: (0, 0)),           # b2
        ],
        out_specs=pl.BlockSpec((1, 8, 128), lambda i: (i, 0, 0)),
        out_shape=jax.ShapeDtypeStruct((num_tiles, 8, 128), jnp.float32),
        compiler_params=pltpu.CompilerParams(
            dimension_semantics=("parallel",),       # independent per-tile partials
            vmem_limit_bytes=48 << 20,               # sized for v7x's 64 MiB VMEM
        ),
    )(s, ns, onehot, rewdone, w1, b1, w2, b2)

    # Partial sums -> mean over the TRUE batch size.
    return jnp.sum(out) / jnp.float32(B)


def _reference(states_u8, next_states_u8, actions_idx, rewards, done, params, gamma=0.9):
    B = states_u8.shape[0]
    s = states_u8.reshape(B, -1).astype(jnp.float32) / 255.0
    ns = next_states_u8.reshape(B, -1).astype(jnp.float32) / 255.0
    hp = jax.lax.Precision.HIGHEST

    h1 = jnp.maximum(jnp.dot(s, params["w1q"], precision=hp) + params["b1q"], 0.0)
    q_all = jnp.dot(h1, params["w2q"], precision=hp) + params["b2q"]
    pred = jnp.take_along_axis(q_all, actions_idx[:, None], axis=1)[:, 0]

    h1t = jnp.maximum(jnp.dot(ns, params["w1t"], precision=hp) + params["b1t"], 0.0)
    qt_all = jnp.dot(h1t, params["w2t"], precision=hp) + params["b2t"]
    target = rewards + gamma * jnp.max(qt_all, axis=1) * (1.0 - done)

    d = pred - target
    ad = jnp.abs(d)
    elem = jnp.where(ad < 1.0, 0.5 * d * d, ad - 0.5)
    return jnp.mean(elem)


if __name__ == "__main__":
    # Small synthetic shapes: batch=2, channels=4, spatial=16x16, hidden=32, 4 actions.
    B, C, H, W = 2, 4, 16, 16
    D = C * H * W
    HID, A = 32, 4

    key = jax.random.PRNGKey(0)
    ks = jax.random.split(key, 12)

    params = {
        "w1q": jax.random.normal(ks[0], (D, HID), jnp.float32) * 0.05,
        "b1q": jax.random.normal(ks[1], (1, HID), jnp.float32) * 0.05,
        "w2q": jax.random.normal(ks[2], (HID, A), jnp.float32) * 0.05,
        "b2q": jax.random.normal(ks[3], (1, A), jnp.float32) * 0.05,
        "w1t": jax.random.normal(ks[4], (D, HID), jnp.float32) * 0.05,
        "b1t": jax.random.normal(ks[5], (1, HID), jnp.float32) * 0.05,
        "w2t": jax.random.normal(ks[6], (HID, A), jnp.float32) * 0.05,
        "b2t": jax.random.normal(ks[7], (1, A), jnp.float32) * 0.05,
    }

    # Raw uint8 observations in [0, 255], as the PyTorch module consumes
    # (np.stack of environment frames), kept uint8 all the way to the kernel.
    # TODO(synk): host-side `action_set.index(action)` / namedtuple unpacking is
    # Python bookkeeping with no device equivalent; actions arrive as indices.
    states = jax.random.randint(ks[8], (B, C, H, W), 0, 256, dtype=jnp.int32).astype(jnp.uint8)
    next_states = jax.random.randint(ks[9], (B, C, H, W), 0, 256, dtype=jnp.int32).astype(jnp.uint8)
    actions_idx = jax.random.randint(ks[10], (B,), 0, A)     # already indices
    rewards = jax.random.uniform(ks[11], (B,), jnp.float32, -1.0, 1.0)
    done = jnp.array([0.0, 1.0], dtype=jnp.float32)

    loss = dqn_loss(states, next_states, actions_idx, rewards, done, params, gamma=0.9)
    jax.block_until_ready(loss)

    ref = _reference(states, next_states, actions_idx, rewards, done, params, gamma=0.9)
    # bf16 MXU operands (f32 accumulation) vs the f32 HIGHEST-precision reference.
    assert jnp.allclose(loss, ref, rtol=5e-2, atol=1e-2), (loss, ref)

    print("KERNEL_OK")
</pallas_src>

<mosaic_0001>
module attributes {stable_mosaic.version = 11 : i64} {
  func.func @_dqn_loss_kernel(%arg0: i32, %arg1: memref<32x1024xi8, #tpu.memory_space<vmem>>, %arg2: memref<32x1024xi8, #tpu.memory_space<vmem>>, %arg3: memref<32x8xf32, #tpu.memory_space<vmem>>, %arg4: memref<32x2xf32, #tpu.memory_space<vmem>>, %arg5: memref<1024x64xbf16, #tpu.memory_space<vmem>>, %arg6: memref<1x64xf32, #tpu.memory_space<vmem>>, %arg7: memref<64x8xbf16, #tpu.memory_space<vmem>>, %arg8: memref<1x8xf32, #tpu.memory_space<vmem>>, %arg9: memref<1x8x128xf32, #tpu.memory_space<vmem>>) attributes {dimension_semantics = [#tpu.dimension_semantics<parallel>], iteration_bounds = array<i64: 1>, scalar_prefetch = 0 : i64, scratch_operands = 0 : i64, tpu.core_type = #tpu.core_type<tc>, window_params = [{transform_indices = @transform_0, window_bounds = array<i64: 32, 1024>}, {transform_indices = @transform_1, window_bounds = array<i64: 32, 1024>}, {transform_indices = @transform_2, window_bounds = array<i64: 32, 8>}, {transform_indices = @transform_3, window_bounds = array<i64: 32, 2>}, {pipeline_mode = #tpu.pipeline_mode<synchronous>, transform_indices = @transform_4, window_bounds = array<i64: 1024, 64>}, {pipeline_mode = #tpu.pipeline_mode<synchronous>, transform_indices = @transform_5, window_bounds = array<i64: 1, 64>}, {pipeline_mode = #tpu.pipeline_mode<synchronous>, transform_indices = @transform_6, window_bounds = array<i64: 64, 8>}, {pipeline_mode = #tpu.pipeline_mode<synchronous>, transform_indices = @transform_7, window_bounds = array<i64: 1, 8>}, {transform_indices = @transform_8, window_bounds = array<i64: 1, 8, 128>}]} {
    %c0 = arith.constant 0 : index
    %c0_0 = arith.constant 0 : index
    %0 = vector.load %arg5[%c0, %c0_0] : memref<1024x64xbf16, #tpu.memory_space<vmem>>, vector<1024x64xbf16>
    %c0_1 = arith.constant 0 : index
    %c0_2 = arith.constant 0 : index
    %1 = vector.load %arg6[%c0_1, %c0_2] : memref<1x64xf32, #tpu.memory_space<vmem>>, vector<1x64xf32>
    %c0_3 = arith.constant 0 : index
    %c0_4 = arith.constant 0 : index
    %2 = vector.load %arg7[%c0_3, %c0_4] : memref<64x8xbf16, #tpu.memory_space<vmem>>, vector<64x8xbf16>
    %c0_5 = arith.constant 0 : index
    %c0_6 = arith.constant 0 : index
    %3 = vector.load %arg8[%c0_5, %c0_6] : memref<1x8xf32, #tpu.memory_space<vmem>>, vector<1x8xf32>
    %c0_7 = arith.constant 0 : index
    %c0_8 = arith.constant 0 : index
    %4 = vector.load %arg1[%c0_7, %c0_8] : memref<32x1024xi8, #tpu.memory_space<vmem>>, vector<32x1024xi8>
    %5 = arith.uitofp %4 : vector<32x1024xi8> to vector<32x1024xf32>
    %6 = arith.truncf %5 : vector<32x1024xf32> to vector<32x1024xbf16>
    %c0_9 = arith.constant 0 : index
    %c0_10 = arith.constant 0 : index
    %7 = vector.load %arg2[%c0_9, %c0_10] : memref<32x1024xi8, #tpu.memory_space<vmem>>, vector<32x1024xi8>
    %8 = arith.uitofp %7 : vector<32x1024xi8> to vector<32x1024xf32>
    %9 = arith.truncf %8 : vector<32x1024xf32> to vector<32x1024xbf16>
    %cst = arith.constant dense<0.000000e+00> : vector<32x64xf32>
    %10 = tpu.matmul %6, %0, %cst {dimension_numbers = #tpu.dot_dimension_numbers<[1], [0], [0], [1], [0, 0, 1, 1], [], []>} : vector<32x1024xbf16>, vector<1024x64xbf16>, vector<32x64xf32> -> vector<32x64xf32>
    %11 = vector.broadcast %1 : vector<1x64xf32> to vector<32x64xf32>
    %12 = arith.addf %10, %11 : vector<32x64xf32>
    %cst_11 = arith.constant 0.000000e+00 : f32
    %13 = vector.broadcast %cst_11 : f32 to vector<32x64xf32>
    %14 = arith.maximumf %12, %13 : vector<32x64xf32>
    %15 = arith.truncf %14 : vector<32x64xf32> to vector<32x64xbf16>
    %cst_12 = arith.constant dense<0.000000e+00> : vector<32x8xf32>
    %16 = tpu.matmul %15, %2, %cst_12 {dimension_numbers = #tpu.dot_dimension_numbers<[1], [0], [0], [1], [0, 0, 1, 1], [], []>} : vector<32x64xbf16>, vector<64x8xbf16>, vector<32x8xf32> -> vector<32x8xf32>
    %17 = vector.broadcast %3 : vector<1x8xf32> to vector<32x8xf32>
    %18 = arith.addf %16, %17 : vector<32x8xf32>
    %cst_13 = arith.constant dense<0.000000e+00> : vector<32x64xf32>
    %19 = tpu.matmul %9, %0, %cst_13 {dimension_numbers = #tpu.dot_dimension_numbers<[1], [0], [0], [1], [0, 0, 1, 1], [], []>} : vector<32x1024xbf16>, vector<1024x64xbf16>, vector<32x64xf32> -> vector<32x64xf32>
    %20 = vector.broadcast %1 : vector<1x64xf32> to vector<32x64xf32>
    %21 = arith.addf %19, %20 : vector<32x64xf32>
    %cst_14 = arith.constant 0.000000e+00 : f32
    %22 = vector.broadcast %cst_14 : f32 to vector<32x64xf32>
    %23 = arith.maximumf %21, %22 : vector<32x64xf32>
    %24 = arith.truncf %23 : vector<32x64xf32> to vector<32x64xbf16>
    %cst_15 = arith.constant dense<0.000000e+00> : vector<32x8xf32>
    %25 = tpu.matmul %24, %2, %cst_15 {dimension_numbers = #tpu.dot_dimension_numbers<[1], [0], [0], [1], [0, 0, 1, 1], [], []>} : vector<32x64xbf16>, vector<64x8xbf16>, vector<32x8xf32> -> vector<32x8xf32>
    %26 = vector.broadcast %3 : vector<1x8xf32> to vector<32x8xf32>
    %27 = arith.addf %25, %26 : vector<32x8xf32>
    %c0_16 = arith.constant 0 : index
    %c0_17 = arith.constant 0 : index
    %28 = vector.load %arg3[%c0_16, %c0_17] : memref<32x8xf32, #tpu.memory_space<vmem>>, vector<32x8xf32>
    %29 = arith.mulf %18, %28 : vector<32x8xf32>
    %cst_18 = arith.constant dense<0.000000e+00> : vector<32xf32>
    %30 = vector.multi_reduction <add>, %29, %cst_18 [1] : vector<32x8xf32> to vector<32xf32>
    %31 = vector.shape_cast %30 : vector<32xf32> to vector<32x1xf32>
    %32 = tpu.iota {dimensions = array<i32: 1>} : vector<32x8xi32>
    %c4_i32 = arith.constant 4 : i32
    %33 = vector.broadcast %c4_i32 : i32 to vector<32x8xi32>
    %34 = arith.cmpi sge, %32, %33 : vector<32x8xi32>
    %cst_19 = arith.constant -1.000000e+30 : f32
    %35 = vector.broadcast %cst_19 : f32 to vector<32x8xf32>
    %36 = arith.select %34, %27, %35 : vector<32x8xi1>, vector<32x8xf32>
    %cst_20 = arith.constant dense<0xFF800000> : vector<32xf32>
    %37 = vector.multi_reduction <maximumf>, %36, %cst_20 [1] : vector<32x8xf32> to vector<32xf32>
    %38 = vector.shape_cast %37 : vector<32xf32> to vector<32x1xf32>
    %c0_21 = arith.constant 0 : index
    %c0_22 = arith.constant 0 : index
    %39 = vector.load %arg4[%c0_21, %c0_22] : memref<32x2xf32, #tpu.memory_space<vmem>>, vector<32x2xf32>
    %40 = vector.extract_strided_slice %39 {offsets = [0, 0], sizes = [32, 1], strides = [1, 1]} : vector<32x2xf32> to vector<32x1xf32>
    %41 = vector.extract_strided_slice %39 {offsets = [0, 1], sizes = [32, 1], strides = [1, 1]} : vector<32x2xf32> to vector<32x1xf32>
    %cst_23 = arith.constant 0.899999976 : f32
    %42 = vector.broadcast %cst_23 : f32 to vector<32x1xf32>
    %43 = arith.mulf %42, %38 : vector<32x1xf32>
    %cst_24 = arith.constant 1.000000e+00 : f32
    %44 = vector.broadcast %cst_24 : f32 to vector<32x1xf32>
    %45 = arith.subf %44, %41 : vector<32x1xf32>
    %46 = arith.mulf %43, %45 : vector<32x1xf32>
    %47 = arith.addf %40, %46 : vector<32x1xf32>
    %48 = arith.subf %31, %47 : vector<32x1xf32>
    %49 = math.absf %48 : vector<32x1xf32>
    %cst_25 = arith.constant 1.000000e+00 : f32
    %50 = vector.broadcast %cst_25 : f32 to vector<32x1xf32>
    %51 = arith.cmpf olt, %49, %50 : vector<32x1xf32>
    %cst_26 = arith.constant 5.000000e-01 : f32
    %52 = vector.broadcast %cst_26 : f32 to vector<32x1xf32>
    %53 = arith.mulf %52, %48 : vector<32x1xf32>
    %54 = arith.mulf %53, %48 : vector<32x1xf32>
    %cst_27 = arith.constant 5.000000e-01 : f32
    %55 = vector.broadcast %cst_27 : f32 to vector<32x1xf32>
    %56 = arith.subf %49, %55 : vector<32x1xf32>
    %57 = arith.select %51, %54, %56 : vector<32x1xi1>, vector<32x1xf32>
    %58 = vector.shape_cast %57 : vector<32x1xf32> to vector<1x32x1xf32>
    %cst_28 = arith.constant dense<0.000000e+00> : vector<1xf32>
    %59 = vector.multi_reduction <add>, %58, %cst_28 [1, 2] : vector<1x32x1xf32> to vector<1xf32>
    %60 = vector.shape_cast %59 : vector<1xf32> to vector<1x1x1xf32>
    %61 = vector.extract %60[0, 0, 0] : f32 from vector<1x1x1xf32>
    %62 = tpu.iota {dimensions = array<i32: 0>} : vector<8x128xi32>
    %63 = tpu.iota {dimensions = array<i32: 1>} : vector<8x128xi32>
    %c0_i32 = arith.constant 0 : i32
    %64 = vector.broadcast %c0_i32 : i32 to vector<8x128xi32>
    %65 = arith.cmpi eq, %62, %64 : vector<8x128xi32>
    %c0_i32_29 = arith.constant 0 : i32
    %66 = vector.broadcast %c0_i32_29 : i32 to vector<8x128xi32>
    %67 = arith.cmpi eq, %63, %66 : vector<8x128xi32>
    %68 = arith.andi %65, %67 : vector<8x128xi1>
    %cst_30 = arith.constant 0.000000e+00 : f32
    %69 = vector.broadcast %61 : f32 to vector<8x128xf32>
    %70 = vector.broadcast %cst_30 : f32 to vector<8x128xf32>
    %71 = arith.select %68, %69, %70 : vector<8x128xi1>, vector<8x128xf32>
    %c0_31 = arith.constant 0 : index
    %c0_32 = arith.constant 0 : index
    %c0_33 = arith.constant 0 : index
    %72 = vector.load %arg9[%c0_31, %c0_32, %c0_33] : memref<1x8x128xf32, #tpu.memory_space<vmem>>, vector<1x8x128xf32>
    %73 = vector.shape_cast %72 : vector<1x8x128xf32> to vector<8x128xf32>
    %74 = vector.shape_cast %71 : vector<8x128xf32> to vector<1x8x128xf32>
    tpu.vector_store %arg9[%c0_31, %c0_32, %c0_33], %74 {strides = array<i32>} : memref<1x8x128xf32, #tpu.memory_space<vmem>>, vector<1x8x128xf32>,
    return
  }
  func.func @transform_0(%arg0: i32) -> (i32, i32) {
    %c0_i32 = arith.constant 0 : i32
    %c0_i32_0 = arith.constant 0 : i32
    return %arg0, %c0_i32 : i32, i32
  }
  func.func @transform_1(%arg0: i32) -> (i32, i32) {
    %c0_i32 = arith.constant 0 : i32
    %c0_i32_0 = arith.constant 0 : i32
    return %arg0, %c0_i32 : i32, i32
  }
  func.func @transform_2(%arg0: i32) -> (i32, i32) {
    %c0_i32 = arith.constant 0 : i32
    %c0_i32_0 = arith.constant 0 : i32
    return %arg0, %c0_i32 : i32, i32
  }
  func.func @transform_3(%arg0: i32) -> (i32, i32) {
    %c0_i32 = arith.constant 0 : i32
    %c0_i32_0 = arith.constant 0 : i32
    return %arg0, %c0_i32 : i32, i32
  }
  func.func @transform_4(%arg0: i32) -> (i32, i32) {
    %c0_i32 = arith.constant 0 : i32
    %c0_i32_0 = arith.constant 0 : i32
    %c0_i32_1 = arith.constant 0 : i32
    return %c0_i32, %c0_i32_0 : i32, i32
  }
  func.func @transform_5(%arg0: i32) -> (i32, i32) {
    %c0_i32 = arith.constant 0 : i32
    %c0_i32_0 = arith.constant 0 : i32
    %c0_i32_1 = arith.constant 0 : i32
    return %c0_i32, %c0_i32_0 : i32, i32
  }
  func.func @transform_6(%arg0: i32) -> (i32, i32) {
    %c0_i32 = arith.constant 0 : i32
    %c0_i32_0 = arith.constant 0 : i32
    %c0_i32_1 = arith.constant 0 : i32
    return %c0_i32, %c0_i32_0 : i32, i32
  }
  func.func @transform_7(%arg0: i32) -> (i32, i32) {
    %c0_i32 = arith.constant 0 : i32
    %c0_i32_0 = arith.constant 0 : i32
    %c0_i32_1 = arith.constant 0 : i32
    return %c0_i32, %c0_i32_0 : i32, i32
  }
  func.func @transform_8(%arg0: i32) -> (i32, i32, i32) {
    %c0_i32 = arith.constant 0 : i32
    %c0_i32_0 = arith.constant 0 : i32
    %c0_i32_1 = arith.constant 0 : i32
    return %arg0, %c0_i32, %c0_i32_0 : i32, i32, i32
  }
}

</mosaic_0001>

<llo_original>
// kernel: tpu_custom_call.1
$region0: #{tpu_custom_call.1}
  #allocation0 [shape = 'u32[]', space=smem, size = 0x4, offset = 0x4, fixed_abs, tag = 'smem constant byte address 0x4 - core index']
  #allocation1 [shape = 'u32[144,128]{1,0:T(1,128)}', space=vmem, size = 0x12000, scoped, tag = 'internal scratch']
  %s0 = inlined_call_operand.vmem [shape: u8[32,1024], index: 0, kind: input, shape index: {}]
  %s1 = inlined_call_operand.vmem [shape: u8[32,1024], index: 1, kind: input, shape index: {}]
  %s2 = inlined_call_operand.vmem [shape: f32[32,8], index: 2, kind: input, shape index: {}]
  %s3 = inlined_call_operand.vmem [shape: f32[32,2], index: 3, kind: input, shape index: {}]
  %s4 = inlined_call_operand.vmem [shape: bf16[1024,64], index: 4, kind: input, shape index: {}]
  %s5 = inlined_call_operand.vmem [shape: f32[1,64], index: 5, kind: input, shape index: {}]
  %s6 = inlined_call_operand.vmem [shape: bf16[64,8], index: 6, kind: input, shape index: {}]
  %s7 = inlined_call_operand.vmem [shape: f32[1,8], index: 7, kind: input, shape index: {}]
  %s8 = inlined_call_operand.hbm [shape: f32[1,8,128], index: 8, kind: output, shape index: {}]
  %s9 = sld [smem:[#allocation0]]
  $region42: #{tpu_custom_call.1} parent=0
    _
  %s11 = ssub.s32 1, %s9
  %s12 = scalar_select 0, %s11, %s9
  $region1: #{tpu_custom_call.1} parent=0
    #allocation2 [shape = 'u8[4096]{0}', space=vmem, size = 0x1000, scoped, tag = 'output window, operand 0, single buffered']
    #allocation3 [shape = 's32[1]{0}', space=sflag, size = 0x4, scoped, tag = 'scoped memory for tpu_custom_call.1']
    %13 = vsyncpa [#allocation3], 0
    // Predicated region
    $region2: #{tpu_custom_call.1} parent=1 // pred_check
      _
    $region3: #{tpu_custom_call.1} parent=1 // pred_check_branch
      %15 = sbr.rel (0) target = $region5
    $region4: #{tpu_custom_call.1} parent=1 // pred_region
      _
    $region5: #{tpu_custom_call.1} parent=1 // pred_fallthru
      _
    // Predicated region
    $region6: #{tpu_custom_call.1} parent=1 // pred_check
      _
    $region7: #{tpu_custom_call.1} parent=1 // pred_check_branch
      %17 = sbr.rel (0) target = $region9
    $region8: #{tpu_custom_call.1} parent=1 // pred_region
      _
    $region9: #{tpu_custom_call.1} parent=1 // pred_fallthru
      _
    // Predicated region
    $region10: #{tpu_custom_call.1} parent=1 // pred_check
      _
    $region11: #{tpu_custom_call.1} parent=1 // pred_check_branch
      %19 = sbr.rel (0) target = $region13
    $region12: #{tpu_custom_call.1} parent=1 // pred_region
      _
    $region13: #{tpu_custom_call.1} parent=1 // pred_fallthru
      _
    // Predicated region
    $region14: #{tpu_custom_call.1} parent=1 // pred_check
      _
    $region15: #{tpu_custom_call.1} parent=1 // pred_check_branch
      %21 = sbr.rel (0) target = $region17
    $region16: #{tpu_custom_call.1} parent=1 // pred_region
      _
    $region17: #{tpu_custom_call.1} parent=1 // pred_fallthru
      _
    // Predicated region
    $region18: #{tpu_custom_call.1} parent=1 // pred_check
      _
    $region19: #{tpu_custom_call.1} parent=1 // pred_check_branch
      %23 = sbr.rel (0) target = $region21
    $region20: #{tpu_custom_call.1} parent=1 // pred_region
      _
    $region21: #{tpu_custom_call.1} parent=1 // pred_fallthru
      _
    // Predicated region
    $region22: #{tpu_custom_call.1} parent=1 // pred_check
      _
    $region23: #{tpu_custom_call.1} parent=1 // pred_check_branch
      %25 = sbr.rel (0) target = $region25
    $region24: #{tpu_custom_call.1} parent=1 // pred_region
      _
    $region25: #{tpu_custom_call.1} parent=1 // pred_fallthru
      _
    // Predicated region
    $region26: #{tpu_custom_call.1} parent=1 // pred_check
      _
    $region27: #{tpu_custom_call.1} parent=1 // pred_check_branch
      %27 = sbr.rel (0) target = $region29
    $region28: #{tpu_custom_call.1} parent=1 // pred_region
      _
    $region29: #{tpu_custom_call.1} parent=1 // pred_fallthru
      _
    // Predicated region
    $region30: #{tpu_custom_call.1} parent=1 // pred_check
      _
    $region31: #{tpu_custom_call.1} parent=1 // pred_check_branch
      %29 = sbr.rel (0) target = $region33
    $region32: #{tpu_custom_call.1} parent=1 // pred_region
      _
    $region33: #{tpu_custom_call.1} parent=1 // pred_fallthru
      _
    %v31 = vld [vmem:[%s4] sm:$0xf]
    %v32 = vld [vmem:[%s4 + $0x4] sm:$0xf]
    %v33 = vld [vmem:[%s4 + $0x8] sm:$0xf]
    %v34 = vld [vmem:[%s4 + $0xc] sm:$0xf]
    %v35 = vld [vmem:[%s4 + $0x10] sm:$0xf]
    %v36 = vld [vmem:[%s4 + $0x14] sm:$0xf]
    %v37 = vld [vmem:[%s4 + $0x18] sm:$0xf]
    %v38 = vld [vmem:[%s4 + $0x1c] sm:$0xf]
    %v39 = vld [vmem:[%s4 + $0x20] sm:$0xf]
    %v40 = vld [vmem:[%s4 + $0x24] sm:$0xf]
    %v41 = vld [vmem:[%s4 + $0x28] sm:$0xf]
    %v42 = vld [vmem:[%s4 + $0x2c] sm:$0xf]
    %v43 = vld [vmem:[%s4 + $0x30] sm:$0xf]
    %v44 = vld [vmem:[%s4 + $0x34] sm:$0xf]
    %v45 = vld [vmem:[%s4 + $0x38] sm:$0xf]
    %v46 = vld [vmem:[%s4 + $0x3c] sm:$0xf]
    %v47 = vld [vmem:[%s4 + $0x40] sm:$0xf]
    %v48 = vld [vmem:[%s4 + $0x44] sm:$0xf]
    %v49 = vld [vmem:[%s4 + $0x48] sm:$0xf]
    %v50 = vld [vmem:[%s4 + $0x4c] sm:$0xf]
    %v51 = vld [vmem:[%s4 + $0x50] sm:$0xf]
    %v52 = vld [vmem:[%s4 + $0x54] sm:$0xf]
    %v53 = vld [vmem:[%s4 + $0x58] sm:$0xf]
    %v54 = vld [vmem:[%s4 + $0x5c] sm:$0xf]
    %v55 = vld [vmem:[%s4 + $0x60] sm:$0xf]
    %v56 = vld [vmem:[%s4 + $0x64] sm:$0xf]
    %v57 = vld [vmem:[%s4 + $0x68] sm:$0xf]
    %v58 = vld [vmem:[%s4 + $0x6c] sm:$0xf]
    %v59 = vld [vmem:[%s4 + $0x70] sm:$0xf]
    %v60 = vld [vmem:[%s4 + $0x74] sm:$0xf]
    %v61 = vld [vmem:[%s4 + $0x78] sm:$0xf]
    %v62 = vld [vmem:[%s4 + $0x7c] sm:$0xf]
    %v63 = vld [vmem:[%s4 + $0x80] sm:$0xf]
    %v64 = vld [vmem:[%s4 + $0x84] sm:$0xf]
    %v65 = vld [vmem:[%s4 + $0x88] sm:$0xf]
    %v66 = vld [vmem:[%s4 + $0x8c] sm:$0xf]
    %v67 = vld [vmem:[%s4 + $0x90] sm:$0xf]
    %v68 = vld [vmem:[%s4 + $0x94] sm:$0xf]
    %v69 = vld [vmem:[%s4 + $0x98] sm:$0xf]
    %v70 = vld [vmem:[%s4 + $0x9c] sm:$0xf]
    %v71 = vld [vmem:[%s4 + $0xa0] sm:$0xf]
    %v72 = vld [vmem:[%s4 + $0xa4] sm:$0xf]
    %v73 = vld [vmem:[%s4 + $0xa8] sm:$0xf]
    %v74 = vld [vmem:[%s4 + $0xac] sm:$0xf]
    %v75 = vld [vmem:[%s4 + $0xb0] sm:$0xf]
    %v76 = vld [vmem:[%s4 + $0xb4] sm:$0xf]
    %v77 = vld [vmem:[%s4 + $0xb8] sm:$0xf]
    %v78 = vld [vmem:[%s4 + $0xbc] sm:$0xf]
    %v79 = vld [vmem:[%s4 + $0xc0] sm:$0xf]
    %v80 = vld [vmem:[%s4 + $0xc4] sm:$0xf]
    %v81 = vld [vmem:[%s4 + $0xc8] sm:$0xf]
    %v82 = vld [vmem:[%s4 + $0xcc] sm:$0xf]
    %v83 = vld [vmem:[%s4 + $0xd0] sm:$0xf]
    %v84 = vld [vmem:[%s4 + $0xd4] sm:$0xf]
    %v85 = vld [vmem:[%s4 + $0xd8] sm:$0xf]
    %v86 = vld [vmem:[%s4 + $0xdc] sm:$0xf]
    %v87 = vld [vmem:[%s4 + $0xe0] sm:$0xf]
    %v88 = vld [vmem:[%s4 + $0xe4] sm:$0xf]
    %v89 = vld [vmem:[%s4 + $0xe8] sm:$0xf]
    %v90 = vld [vmem:[%s4 + $0xec] sm:$0xf]
    %v91 = vld [vmem:[%s4 + $0xf0] sm:$0xf]
    %v92 = vld [vmem:[%s4 + $0xf4] sm:$0xf]
    %v93 = vld [vmem:[%s4 + $0xf8] sm:$0xf]
    %v94 = vld [vmem:[%s4 + $0xfc] sm:$0xf]
    %v95 = vld [vmem:[%s4 + $0x100] sm:$0xf]
    %v96 = vld [vmem:[%s4 + $0x104] sm:$0xf]
    %v97 = vld [vmem:[%s4 + $0x108] sm:$0xf]
    %v98 = vld [vmem:[%s4 + $0x10c] sm:$0xf]
    %v99 = vld [vmem:[%s4 + $0x110] sm:$0xf]
    %v100 = vld [vmem:[%s4 + $0x114] sm:$0xf]
    %v101 = vld [vmem:[%s4 + $0x118] sm:$0xf]
    %v102 = vld [vmem:[%s4 + $0x11c] sm:$0xf]
    %v103 = vld [vmem:[%s4 + $0x120] sm:$0xf]
    %v104 = vld [vmem:[%s4 + $0x124] sm:$0xf]
    %v105 = vld [vmem:[%s4 + $0x128] sm:$0xf]
    %v106 = vld [vmem:[%s4 + $0x12c] sm:$0xf]
    %v107 = vld [vmem:[%s4 + $0x130] sm:$0xf]
    %v108 = vld [vmem:[%s4 + $0x134] sm:$0xf]
    %v109 = vld [vmem:[%s4 + $0x138] sm:$0xf]
    %v110 = vld [vmem:[%s4 + $0x13c] sm:$0xf]
    %v111 = vld [vmem:[%s4 + $0x140] sm:$0xf]
    %v112 = vld [vmem:[%s4 + $0x144] sm:$0xf]
    %v113 = vld [vmem:[%s4 + $0x148] sm:$0xf]
    %v114 = vld [vmem:[%s4 + $0x14c] sm:$0xf]
    %v115 = vld [vmem:[%s4 + $0x150] sm:$0xf]
    %v116 = vld [vmem:[%s4 + $0x154] sm:$0xf]
    %v117 = vld [vmem:[%s4 + $0x158] sm:$0xf]
    %v118 = vld [vmem:[%s4 + $0x15c] sm:$0xf]
    %v119 = vld [vmem:[%s4 + $0x160] sm:$0xf]
    %v120 = vld [vmem:[%s4 + $0x164] sm:$0xf]
    %v121 = vld [vmem:[%s4 + $0x168] sm:$0xf]
    %v122 = vld [vmem:[%s4 + $0x16c] sm:$0xf]
    %v123 = vld [vmem:[%s4 + $0x170] sm:$0xf]
    %v124 = vld [vmem:[%s4 + $0x174] sm:$0xf]
    %v125 = vld [vmem:[%s4 + $0x178] sm:$0xf]
    %v126 = vld [vmem:[%s4 + $0x17c] sm:$0xf]
    %v127 = vld [vmem:[%s4 + $0x180] sm:$0xf]
    %v128 = vld [vmem:[%s4 + $0x184] sm:$0xf]
    %v129 = vld [vmem:[%s4 + $0x188] sm:$0xf]
    %v130 = vld [vmem:[%s4 + $0x18c] sm:$0xf]
    %v131 = vld [vmem:[%s4 + $0x190] sm:$0xf]
    %v132 = vld [vmem:[%s4 + $0x194] sm:$0xf]
    %v133 = vld [vmem:[%s4 + $0x198] sm:$0xf]
    %v134 = vld [vmem:[%s4 + $0x19c] sm:$0xf]
    %v135 = vld [vmem:[%s4 + $0x1a0] sm:$0xf]
    %v136 = vld [vmem:[%s4 + $0x1a4] sm:$0xf]
    %v137 = vld [vmem:[%s4 + $0x1a8] sm:$0xf]
    %v138 = vld [vmem:[%s4 + $0x1ac] sm:$0xf]
    %v139 = vld [vmem:[%s4 + $0x1b0] sm:$0xf]
    %v140 = vld [vmem:[%s4 + $0x1b4] sm:$0xf]
    %v141 = vld [vmem:[%s4 + $0x1b8] sm:$0xf]
    %v142 = vld [vmem:[%s4 + $0x1bc] sm:$0xf]
    %v143 = vld [vmem:[%s4 + $0x1c0] sm:$0xf]
    %v144 = vld [vmem:[%s4 + $0x1c4] sm:$0xf]
    %v145 = vld [vmem:[%s4 + $0x1c8] sm:$0xf]
    %v146 = vld [vmem:[%s4 + $0x1cc] sm:$0xf]
    %v147 = vld [vmem:[%s4 + $0x1d0] sm:$0xf]
    %v148 = vld [vmem:[%s4 + $0x1d4] sm:$0xf]
    %v149 = vld [vmem:[%s4 + $0x1d8] sm:$0xf]
    %v150 = vld [vmem:[%s4 + $0x1dc] sm:$0xf]
    %v151 = vld [vmem:[%s4 + $0x1e0] sm:$0xf]
    %v152 = vld [vmem:[%s4 + $0x1e4] sm:$0xf]
    %v153 = vld [vmem:[%s4 + $0x1e8] sm:$0xf]
    %v154 = vld [vmem:[%s4 + $0x1ec] sm:$0xf]
    %v155 = vld [vmem:[%s4 + $0x1f0] sm:$0xf]
    %v156 = vld [vmem:[%s4 + $0x1f4] sm:$0xf]
    %v157 = vld [vmem:[%s4 + $0x1f8] sm:$0xf]
    %v158 = vld [vmem:[%s4 + $0x1fc] sm:$0xf]
    %v159 = vld [vmem:[%s5] sm:$0x1]
    %v160 = vld [vmem:[%s6] sm:$0xf]
    %v161 = vld [vmem:[%s6 + $0x4] sm:$0xf]
    %v162 = vld [vmem:[%s6 + $0x8] sm:$0xf]
    %v163 = vld [vmem:[%s6 + $0xc] sm:$0xf]
    %v164 = vld [vmem:[%s6 + $0x10] sm:$0xf]
    %v165 = vld [vmem:[%s6 + $0x14] sm:$0xf]
    %v166 = vld [vmem:[%s6 + $0x18] sm:$0xf]
    %v167 = vld [vmem:[%s6 + $0x1c] sm:$0xf]
    %v168 = vld [vmem:[%s7] sm:$0x1]
    %v169 = vld [vmem:[%s0] sm:$0xff]
    %v170 = vld [vmem:[%s0 + $0x8] sm:$0xff]
    %v171 = vld [vmem:[%s0 + $0x10] sm:$0xff]
    %v172 = vld [vmem:[%s0 + $0x18] sm:$0xff]
    %v173 = vld [vmem:[%s0 + $0x20] sm:$0xff]
    %v174 = vld [vmem:[%s0 + $0x28] sm:$0xff]
    %v175 = vld [vmem:[%s0 + $0x30] sm:$0xff]
    %v176 = vld [vmem:[%s0 + $0x38] sm:$0xff]
    %v177 = vunpack.c.l.u8.bf16 %v169
    %v178 = vunpack.c.l.u8.bf16 %v170
    %v179 = vunpack.c.l.u8.bf16 %v171
    %v180 = vunpack.c.l.u8.bf16 %v172
    %v181 = vunpack.c.l.u8.bf16 %v173
    %v182 = vunpack.c.l.u8.bf16 %v174
    %v183 = vunpack.c.l.u8.bf16 %v175
    %v184 = vunpack.c.l.u8.bf16 %v176
    %v185 = vunpack.c.h.u8.bf16 %v169
    %v186 = vunpack.c.h.u8.bf16 %v170
    %v187 = vunpack.c.h.u8.bf16 %v171
    %v188 = vunpack.c.h.u8.bf16 %v172
    %v189 = vunpack.c.h.u8.bf16 %v173
    %v190 = vunpack.c.h.u8.bf16 %v174
    %v191 = vunpack.c.h.u8.bf16 %v175
    %v192 = vunpack.c.h.u8.bf16 %v176
    %v193 = vld [vmem:[%s1] sm:$0xff]
    %v194 = vld [vmem:[%s1 + $0x8] sm:$0xff]
    %v195 = vld [vmem:[%s1 + $0x10] sm:$0xff]
    %v196 = vld [vmem:[%s1 + $0x18] sm:$0xff]
    %v197 = vld [vmem:[%s1 + $0x20] sm:$0xff]
    %v198 = vld [vmem:[%s1 + $0x28] sm:$0xff]
    %v199 = vld [vmem:[%s1 + $0x30] sm:$0xff]
    %v200 = vld [vmem:[%s1 + $0x38] sm:$0xff]
    %v201 = vunpack.c.l.u8.bf16 %v193
    %v202 = vunpack.c.l.u8.bf16 %v194
    %v203 = vunpack.c.l.u8.bf16 %v195
    %v204 = vunpack.c.l.u8.bf16 %v196
    %v205 = vunpack.c.l.u8.bf16 %v197
    %v206 = vunpack.c.l.u8.bf16 %v198
    %v207 = vunpack.c.l.u8.bf16 %v199
    %v208 = vunpack.c.l.u8.bf16 %v200
    %v209 = vunpack.c.h.u8.bf16 %v193
    %v210 = vunpack.c.h.u8.bf16 %v194
    %v211 = vunpack.c.h.u8.bf16 %v195
    %v212 = vunpack.c.h.u8.bf16 %v196
    %v213 = vunpack.c.h.u8.bf16 %v197
    %v214 = vunpack.c.h.u8.bf16 %v198
    %v215 = vunpack.c.h.u8.bf16 %v199
    %v216 = vunpack.c.h.u8.bf16 %v200
    %v218 = vlaneseq
    %v219 = vshrl.u32 %v218, 7
    %v220 = vsub.s32 0, %v219
    %v221 = vrot.slane %v159, %v220
    %v351 = vunpack.c.l.b16 %v31
    %v352 = vunpack.c.l.b16 %v32
    %v353 = vunpack.c.l.b16 %v33
    %v354 = vunpack.c.l.b16 %v34
    %v355 = vunpack.c.l.b16 %v35
    %v356 = vunpack.c.l.b16 %v36
    %v357 = vunpack.c.l.b16 %v37
    %v358 = vunpack.c.l.b16 %v38
    %v359 = vunpack.c.l.b16 %v39
    %v360 = vunpack.c.l.b16 %v40
    %v361 = vunpack.c.l.b16 %v41
    %v362 = vunpack.c.l.b16 %v42
    %v363 = vunpack.c.l.b16 %v43
    %v364 = vunpack.c.l.b16 %v44
    %v365 = vunpack.c.l.b16 %v45
    %v366 = vunpack.c.l.b16 %v46
    %v367 = vunpack.c.l.b16 %v47
    %v368 = vunpack.c.l.b16 %v48
    %v369 = vunpack.c.l.b16 %v49
    %v370 = vunpack.c.l.b16 %v50
    %v371 = vunpack.c.l.b16 %v51
    %v372 = vunpack.c.l.b16 %v52
    %v373 = vunpack.c.l.b16 %v53
    %v374 = vunpack.c.l.b16 %v54
    %v375 = vunpack.c.l.b16 %v55
    %v376 = vunpack.c.l.b16 %v56
    %v377 = vunpack.c.l.b16 %v57
    %v378 = vunpack.c.l.b16 %v58
    %v379 = vunpack.c.l.b16 %v59
    %v380 = vunpack.c.l.b16 %v60
    %v381 = vunpack.c.l.b16 %v61
    %v382 = vunpack.c.l.b16 %v62
    %v383 = vunpack.c.l.b16 %v63
    %v384 = vunpack.c.l.b16 %v64
    %v385 = vunpack.c.l.b16 %v65
    %v386 = vunpack.c.l.b16 %v66
    %v387 = vunpack.c.l.b16 %v67
    %v388 = vunpack.c.l.b16 %v68
    %v389 = vunpack.c.l.b16 %v69
    %v390 = vunpack.c.l.b16 %v70
    %v391 = vunpack.c.l.b16 %v71
    %v392 = vunpack.c.l.b16 %v72
    %v393 = vunpack.c.l.b16 %v73
    %v394 = vunpack.c.l.b16 %v74
    %v395 = vunpack.c.l.b16 %v75
    %v396 = vunpack.c.l.b16 %v76
    %v397 = vunpack.c.l.b16 %v77
    %v398 = vunpack.c.l.b16 %v78
    %v399 = vunpack.c.l.b16 %v79
    %v400 = vunpack.c.l.b16 %v80
    %v401 = vunpack.c.l.b16 %v81
    %v402 = vunpack.c.l.b16 %v82
    %v403 = vunpack.c.l.b16 %v83
    %v404 = vunpack.c.l.b16 %v84
    %v405 = vunpack.c.l.b16 %v85
    %v406 = vunpack.c.l.b16 %v86
    %v407 = vunpack.c.l.b16 %v87
    %v408 = vunpack.c.l.b16 %v88
    %v409 = vunpack.c.l.b16 %v89
    %v410 = vunpack.c.l.b16 %v90
    %v411 = vunpack.c.l.b16 %v91
    %v412 = vunpack.c.l.b16 %v92
    %v413 = vunpack.c.l.b16 %v93
    %v414 = vunpack.c.l.b16 %v94
    %v415 = vunpack.c.l.b16 %v95
    %v416 = vunpack.c.l.b16 %v96
    %v417 = vunpack.c.l.b16 %v97
    %v418 = vunpack.c.l.b16 %v98
    %v419 = vunpack.c.l.b16 %v99
    %v420 = vunpack.c.l.b16 %v100
    %v421 = vunpack.c.l.b16 %v101
    %v422 = vunpack.c.l.b16 %v102
    %v423 = vunpack.c.l.b16 %v103
    %v424 = vunpack.c.l.b16 %v104
    %v425 = vunpack.c.l.b16 %v105
    %v426 = vunpack.c.l.b16 %v106
    %v427 = vunpack.c.l.b16 %v107
    %v428 = vunpack.c.l.b16 %v108
    %v429 = vunpack.c.l.b16 %v109
    %v430 = vunpack.c.l.b16 %v110
    %v431 = vunpack.c.l.b16 %v111
    %v432 = vunpack.c.l.b16 %v112
    %v433 = vunpack.c.l.b16 %v113
    %v434 = vunpack.c.l.b16 %v114
    %v435 = vunpack.c.l.b16 %v115
    %v436 = vunpack.c.l.b16 %v116
    %v437 = vunpack.c.l.b16 %v117
    %v438 = vunpack.c.l.b16 %v118
    %v439 = vunpack.c.l.b16 %v119
    %v440 = vunpack.c.l.b16 %v120
    %v441 = vunpack.c.l.b16 %v121
    %v442 = vunpack.c.l.b16 %v122
    %v443 = vunpack.c.l.b16 %v123
    %v444 = vunpack.c.l.b16 %v124
    %v445 = vunpack.c.l.b16 %v125
    %v446 = vunpack.c.l.b16 %v126
    %v447 = vunpack.c.l.b16 %v127
    %v448 = vunpack.c.l.b16 %v128
    %v449 = vunpack.c.l.b16 %v129
    %v450 = vunpack.c.l.b16 %v130
    %v451 = vunpack.c.l.b16 %v131
    %v452 = vunpack.c.l.b16 %v132
    %v453 = vunpack.c.l.b16 %v133
    %v454 = vunpack.c.l.b16 %v134
    %v455 = vunpack.c.l.b16 %v135
    %v456 = vunpack.c.l.b16 %v136
    %v457 = vunpack.c.l.b16 %v137
    %v458 = vunpack.c.l.b16 %v138
    %v459 = vunpack.c.l.b16 %v139
    %v460 = vunpack.c.l.b16 %v140
    %v461 = vunpack.c.l.b16 %v141
    %v462 = vunpack.c.l.b16 %v142
    %v463 = vunpack.c.l.b16 %v143
    %v464 = vunpack.c.l.b16 %v144
    %v465 = vunpack.c.l.b16 %v145
    %v466 = vunpack.c.l.b16 %v146
    %v467 = vunpack.c.l.b16 %v147
    %v468 = vunpack.c.l.b16 %v148
    %v469 = vunpack.c.l.b16 %v149
    %v470 = vunpack.c.l.b16 %v150
    %v471 = vunpack.c.l.b16 %v151
    %v472 = vunpack.c.l.b16 %v152
    %v473 = vunpack.c.l.b16 %v153
    %v474 = vunpack.c.l.b16 %v154
    %v475 = vunpack.c.l.b16 %v155
    %v476 = vunpack.c.l.b16 %v156
    %v477 = vunpack.c.l.b16 %v157
    %v478 = vunpack.c.l.b16 %v158
    %v479 = vpack.c.b16 %v352, %v351
    %v480 = vpack.c.b16 %v354, %v353
    %v481 = vpack.c.b16 %v356, %v355
    %v482 = vpack.c.b16 %v358, %v357
    %v483 = vpack.c.b16 %v360, %v359
    %v484 = vpack.c.b16 %v362, %v361
    %v485 = vpack.c.b16 %v364, %v363
    %v486 = vpack.c.b16 %v366, %v365
    %v487 = vpack.c.b16 %v368, %v367
    %v488 = vpack.c.b16 %v370, %v369
    %v489 = vpack.c.b16 %v372, %v371
    %v490 = vpack.c.b16 %v374, %v373
    %v491 = vpack.c.b16 %v376, %v375
    %v492 = vpack.c.b16 %v378, %v377
    %v493 = vpack.c.b16 %v380, %v379
    %v494 = vpack.c.b16 %v382, %v381
    %v495 = vpack.c.b16 %v384, %v383
    %v496 = vpack.c.b16 %v386, %v385
    %v497 = vpack.c.b16 %v388, %v387
    %v498 = vpack.c.b16 %v390, %v389
    %v499 = vpack.c.b16 %v392, %v391
    %v500 = vpack.c.b16 %v394, %v393
    %v501 = vpack.c.b16 %v396, %v395
    %v502 = vpack.c.b16 %v398, %v397
    %v503 = vpack.c.b16 %v400, %v399
    %v504 = vpack.c.b16 %v402, %v401
    %v505 = vpack.c.b16 %v404, %v403
    %v506 = vpack.c.b16 %v406, %v405
    %v507 = vpack.c.b16 %v408, %v407
    %v508 = vpack.c.b16 %v410, %v409
    %v509 = vpack.c.b16 %v412, %v411
    %v510 = vpack.c.b16 %v414, %v413
    %v511 = vpack.c.b16 %v416, %v415
    %v512 = vpack.c.b16 %v418, %v417
    %v513 = vpack.c.b16 %v420, %v419
    %v514 = vpack.c.b16 %v422, %v421
    %v515 = vpack.c.b16 %v424, %v423
    %v516 = vpack.c.b16 %v426, %v425
    %v517 = vpack.c.b16 %v428, %v427
    %v518 = vpack.c.b16 %v430, %v429
    %v519 = vpack.c.b16 %v432, %v431
    %v520 = vpack.c.b16 %v434, %v433
    %v521 = vpack.c.b16 %v436, %v435
    %v522 = vpack.c.b16 %v438, %v437
    %v523 = vpack.c.b16 %v440, %v439
    %v524 = vpack.c.b16 %v442, %v441
    %v525 = vpack.c.b16 %v444, %v443
    %v526 = vpack.c.b16 %v446, %v445
    %v527 = vpack.c.b16 %v448, %v447
    %v528 = vpack.c.b16 %v450, %v449
    %v529 = vpack.c.b16 %v452, %v451
    %v530 = vpack.c.b16 %v454, %v453
    %v531 = vpack.c.b16 %v456, %v455
    %v532 = vpack.c.b16 %v458, %v457
    %v533 = vpack.c.b16 %v460, %v459
    %v534 = vpack.c.b16 %v462, %v461
    %v535 = vpack.c.b16 %v464, %v463
    %v536 = vpack.c.b16 %v466, %v465
    %v537 = vpack.c.b16 %v468, %v467
    %v538 = vpack.c.b16 %v470, %v469
    %v539 = vpack.c.b16 %v472, %v471
    %v540 = vpack.c.b16 %v474, %v473
    %v541 = vpack.c.b16 %v476, %v475
    %v542 = vpack.c.b16 %v478, %v477
    %607 = vmatprep.subr.bf16.mxu0 0
    %608 = vmatpush1.bf16.msra.mxu0 %v479
    %609 = vmatprep.subr.bf16.mxu0 0
    %610 = vmatpush1.bf16.msra.mxu0 %v480
    %611 = vmatprep.subr.bf16.mxu0 0
    %612 = vmatpush1.bf16.msra.mxu0 %v481
    %613 = vmatprep.subr.bf16.mxu0 0
    %614 = vmatpush1.bf16.msra.mxu0 %v482
    %615 = vmatprep.subr.bf16.mxu0 0
    %616 = vmatpush1.bf16.msra.mxu0 %v483
    %617 = vmatprep.subr.bf16.mxu0 0
    %618 = vmatpush1.bf16.msra.mxu0 %v484
    %619 = vmatprep.subr.bf16.mxu0 0
    %620 = vmatpush1.bf16.msra.mxu0 %v485
    %621 = vmatprep.subr.bf16.mxu0 0
    %622 = vmatpush1.bf16.msra.mxu0 %v486
    %623 = vmatprep.subr.bf16.mxu0 0
    %624 = vmatpush1.bf16.msra.mxu0 %v487
    %625 = vmatprep.subr.bf16.mxu0 0
    %626 = vmatpush1.bf16.msra.mxu0 %v488
    %627 = vmatprep.subr.bf16.mxu0 0
    %628 = vmatpush1.bf16.msra.mxu0 %v489
    %629 = vmatprep.subr.bf16.mxu0 0
    %630 = vmatpush1.bf16.msra.mxu0 %v490
    %631 = vmatprep.subr.bf16.mxu0 0
    %632 = vmatpush1.bf16.msra.mxu0 %v491
    %633 = vmatprep.subr.bf16.mxu0 0
    %634 = vmatpush1.bf16.msra.mxu0 %v492
    %635 = vmatprep.subr.bf16.mxu0 0
    %636 = vmatpush1.bf16.msra.mxu0 %v493
    %637 = vmatprep.subr.bf16.mxu0 0
    %638 = vmatpush1.bf16.msra.mxu0 %v494
    %639 = vmatprep.mubr.bf16.mxu0 %v178
    %640 = vmatmul.mubr.bf16.gmra.mrb[0].mxu0 %v177
    %v641 = vpop.f32.mrb[0].mxu0
    %v642 = vadd.f32 %v221, %v641
    %v643 = vpop.f32.mrb[0].mxu0
    %v644 = vpop.f32.mrb[0].mxu0
    %v645 = vadd.f32 %v221, %v644
    %v646 = vpop.f32.mrb[0].mxu0
    %647 = vmatprep.mubr.bf16.mxu0 %v186
    %648 = vmatmul.mubr.bf16.gmra.mrb[0].mxu0 %v185
    %v649 = vpop.f32.mrb[0].mxu0
    %v650 = vadd.f32 %v221, %v649
    %v651 = vpop.f32.mrb[0].mxu0
    %v652 = vpop.f32.mrb[0].mxu0
    %v653 = vadd.f32 %v221, %v652
    %v654 = vpop.f32.mrb[0].mxu0
    %655 = vdwg.mxu0
    %656 = vmatprep.subr.bf16.mxu0 0
    %657 = vmatpush1.bf16.msra.mxu0 %v495
    %658 = vmatprep.subr.bf16.mxu0 0
    %659 = vmatpush1.bf16.msra.mxu0 %v496
    %660 = vmatprep.subr.bf16.mxu0 0
    %661 = vmatpush1.bf16.msra.mxu0 %v497
    %662 = vmatprep.subr.bf16.mxu0 0
    %663 = vmatpush1.bf16.msra.mxu0 %v498
    %664 = vmatprep.subr.bf16.mxu0 0
    %665 = vmatpush1.bf16.msra.mxu0 %v499
    %666 = vmatprep.subr.bf16.mxu0 0
    %667 = vmatpush1.bf16.msra.mxu0 %v500
    %668 = vmatprep.subr.bf16.mxu0 0
    %669 = vmatpush1.bf16.msra.mxu0 %v501
    %670 = vmatprep.subr.bf16.mxu0 0
    %671 = vmatpush1.bf16.msra.mxu0 %v502
    %672 = vmatprep.subr.bf16.mxu0 0
    %673 = vmatpush1.bf16.msra.mxu0 %v503
    %674 = vmatprep.subr.bf16.mxu0 0
    %675 = vmatpush1.bf16.msra.mxu0 %v504
    %676 = vmatprep.subr.bf16.mxu0 0
    %677 = vmatpush1.bf16.msra.mxu0 %v505
    %678 = vmatprep.subr.bf16.mxu0 0
    %679 = vmatpush1.bf16.msra.mxu0 %v506
    %680 = vmatprep.subr.bf16.mxu0 0
    %681 = vmatpush1.bf16.msra.mxu0 %v507
    %682 = vmatprep.subr.bf16.mxu0 0
    %683 = vmatpush1.bf16.msra.mxu0 %v508
    %684 = vmatprep.subr.bf16.mxu0 0
    %685 = vmatpush1.bf16.msra.mxu0 %v509
    %686 = vmatprep.subr.bf16.mxu0 0
    %687 = vmatpush1.bf16.msra.mxu0 %v510
    %688 = vmatprep.mubr.bf16.mxu0 %v180
    %689 = vmatmul.mubr.bf16.gmra.mrb[0].mxu0 %v179
    %v690 = vpop.f32.mrb[0].mxu0
    %v691 = vadd.f32 %v642, %v690
    %v692 = vpop.f32.mrb[0].mxu0
    %v693 = vpop.f32.mrb[0].mxu0
    %v694 = vadd.f32 %v645, %v693
    %v695 = vpop.f32.mrb[0].mxu0
    %696 = vmatprep.mubr.bf16.mxu0 %v188
    %697 = vmatmul.mubr.bf16.gmra.mrb[0].mxu0 %v187
    %v698 = vpop.f32.mrb[0].mxu0
    %v699 = vadd.f32 %v650, %v698
    %v700 = vpop.f32.mrb[0].mxu0
    %v701 = vpop.f32.mrb[0].mxu0
    %v702 = vadd.f32 %v653, %v701
    %v703 = vpop.f32.mrb[0].mxu0
    %704 = vdwg.mxu0
    %705 = vmatprep.subr.bf16.mxu0 0
    %706 = vmatpush1.bf16.msra.mxu0 %v511
    %707 = vmatprep.subr.bf16.mxu0 0
    %708 = vmatpush1.bf16.msra.mxu0 %v512
    %709 = vmatprep.subr.bf16.mxu0 0
    %710 = vmatpush1.bf16.msra.mxu0 %v513
    %711 = vmatprep.subr.bf16.mxu0 0
    %712 = vmatpush1.bf16.msra.mxu0 %v514
    %713 = vmatprep.subr.bf16.mxu0 0
    %714 = vmatpush1.bf16.msra.mxu0 %v515
    %715 = vmatprep.subr.bf16.mxu0 0
    %716 = vmatpush1.bf16.msra.mxu0 %v516
    %717 = vmatprep.subr.bf16.mxu0 0
    %718 = vmatpush1.bf16.msra.mxu0 %v517
    %719 = vmatprep.subr.bf16.mxu0 0
    %720 = vmatpush1.bf16.msra.mxu0 %v518
    %721 = vmatprep.subr.bf16.mxu0 0
    %722 = vmatpush1.bf16.msra.mxu0 %v519
    %723 = vmatprep.subr.bf16.mxu0 0
    %724 = vmatpush1.bf16.msra.mxu0 %v520
    %725 = vmatprep.subr.bf16.mxu0 0
    %726 = vmatpush1.bf16.msra.mxu0 %v521
    %727 = vmatprep.subr.bf16.mxu0 0
    %728 = vmatpush1.bf16.msra.mxu0 %v522
    %729 = vmatprep.subr.bf16.mxu0 0
    %730 = vmatpush1.bf16.msra.mxu0 %v523
    %731 = vmatprep.subr.bf16.mxu0 0
    %732 = vmatpush1.bf16.msra.mxu0 %v524
    %733 = vmatprep.subr.bf16.mxu0 0
    %734 = vmatpush1.bf16.msra.mxu0 %v525
    %735 = vmatprep.subr.bf16.mxu0 0
    %736 = vmatpush1.bf16.msra.mxu0 %v526
    %737 = vmatprep.mubr.bf16.mxu0 %v182
    %738 = vmatmul.mubr.bf16.gmra.mrb[0].mxu0 %v181
    %v739 = vpop.f32.mrb[0].mxu0
    %v740 = vadd.f32 %v691, %v739
    %v741 = vpop.f32.mrb[0].mxu0
    %v742 = vpop.f32.mrb[0].mxu0
    %v743 = vadd.f32 %v694, %v742
    %v744 = vpop.f32.mrb[0].mxu0
    %745 = vmatprep.mubr.bf16.mxu0 %v190
    %746 = vmatmul.mubr.bf16.gmra.mrb[0].mxu0 %v189
    %v747 = vpop.f32.mrb[0].mxu0
    %v748 = vadd.f32 %v699, %v747
    %v749 = vpop.f32.mrb[0].mxu0
    %v750 = vpop.f32.mrb[0].mxu0
    %v751 = vadd.f32 %v702, %v750
    %v752 = vpop.f32.mrb[0].mxu0
    %753 = vdwg.mxu0
    %754 = vmatprep.subr.bf16.mxu0 0
    %755 = vmatpush1.bf16.msra.mxu0 %v527
    %756 = vmatprep.subr.bf16.mxu0 0
    %757 = vmatpush1.bf16.msra.mxu0 %v528
    %758 = vmatprep.subr.bf16.mxu0 0
    %759 = vmatpush1.bf16.msra.mxu0 %v529
    %760 = vmatprep.subr.bf16.mxu0 0
    %761 = vmatpush1.bf16.msra.mxu0 %v530
    %762 = vmatprep.subr.bf16.mxu0 0
    %763 = vmatpush1.bf16.msra.mxu0 %v531
    %764 = vmatprep.subr.bf16.mxu0 0
    %765 = vmatpush1.bf16.msra.mxu0 %v532
    %766 = vmatprep.subr.bf16.mxu0 0
    %767 = vmatpush1.bf16.msra.mxu0 %v533
    %768 = vmatprep.subr.bf16.mxu0 0
    %769 = vmatpush1.bf16.msra.mxu0 %v534
    %770 = vmatprep.subr.bf16.mxu0 0
    %771 = vmatpush1.bf16.msra.mxu0 %v535
    %772 = vmatprep.subr.bf16.mxu0 0
    %773 = vmatpush1.bf16.msra.mxu0 %v536
    %774 = vmatprep.subr.bf16.mxu0 0
    %775 = vmatpush1.bf16.msra.mxu0 %v537
    %776 = vmatprep.subr.bf16.mxu0 0
    %777 = vmatpush1.bf16.msra.mxu0 %v538
    %778 = vmatprep.subr.bf16.mxu0 0
    %779 = vmatpush1.bf16.msra.mxu0 %v539
    %780 = vmatprep.subr.bf16.mxu0 0
    %781 = vmatpush1.bf16.msra.mxu0 %v540
    %782 = vmatprep.subr.bf16.mxu0 0
    %783 = vmatpush1.bf16.msra.mxu0 %v541
    %784 = vmatprep.subr.bf16.mxu0 0
    %785 = vmatpush1.bf16.msra.mxu0 %v542
    %786 = vmatprep.mubr.bf16.mxu0 %v184
    %787 = vmatmul.mubr.bf16.gmra.mrb[0].mxu0 %v183
    %v788 = vpop.f32.mrb[0].mxu0
    %v789 = vadd.f32 %v740, %v788
    %v790 = vpop.f32.mrb[0].mxu0
    %v791 = vpop.f32.mrb[0].mxu0
    %v792 = vadd.f32 %v743, %v791
    %v793 = vpop.f32.mrb[0].mxu0
    %794 = vmatprep.mubr.bf16.mxu0 %v192
    %795 = vmatmul.mubr.bf16.gmra.mrb[0].mxu0 %v191
    %v796 = vpop.f32.mrb[0].mxu0
    %v797 = vadd.f32 %v748, %v796
    %v798 = vpop.f32.mrb[0].mxu0
    %v799 = vpop.f32.mrb[0].mxu0
    %v800 = vadd.f32 %v751, %v799
    %v801 = vpop.f32.mrb[0].mxu0
    %802 = vdwg.mxu0
    %v803 = vmax.f32 %v789, 0.0
    %v804 = vmax.f32 %v792, 0.0
    %v805 = vmax.f32 %v797, 0.0
    %v806 = vmax.f32 %v800, 0.0
    %v807 = vpack.c.bf16 %v804, %v803
    %v808 = vpack.c.bf16 %v806, %v805
    %v810 = vlaneseq
    %v811 = vshrl.u32 %v810, 7
    %v812 = vsub.s32 0, %v811
    %v813 = vrot.slane %v168, %v812
    %v823 = vunpack.c.l.b16 %v160
    %v824 = vunpack.c.l.b16 %v161
    %v825 = vunpack.c.l.b16 %v162
    %v826 = vunpack.c.l.b16 %v163
    %v827 = vunpack.c.l.b16 %v164
    %v828 = vunpack.c.l.b16 %v165
    %v829 = vunpack.c.l.b16 %v166
    %v830 = vunpack.c.l.b16 %v167
    %v831 = vpack.c.b16 %v824, %v823
    %v832 = vpack.c.b16 %v826, %v825
    %v833 = vpack.c.b16 %v828, %v827
    %v834 = vpack.c.b16 %v830, %v829
    %vm839 = vcmask 523264
    %v841 = vsel %vm839, %v807, 0
    %v844 = vsel %vm839, %v808, 0
    %846 = vmatprep.subr.bf16.mxu0 0
    %847 = vmatpush1.bf16.msra.mxu0 %v831
    %848 = vmatprep.subr.bf16.mxu0 0
    %849 = vmatpush1.bf16.msra.mxu0 %v832
    %850 = vmatprep.subr.bf16.mxu0 0
    %851 = vmatpush1.bf16.msra.mxu0 %v833
    %852 = vmatprep.subr.bf16.mxu0 0
    %853 = vmatpush1.bf16.msra.mxu0 %v834
    %854 = vmatprep.subr.bf16.mxu0 0
    %855 = vmatpush1.bf16.msra.mxu0 0
    %856 = vmatprep.subr.bf16.mxu0 0
    %857 = vmatpush1.bf16.msra.mxu0 0
    %858 = vmatprep.subr.bf16.mxu0 0
    %859 = vmatpush1.bf16.msra.mxu0 0
    %860 = vmatprep.subr.bf16.mxu0 0
    %861 = vmatpush1.bf16.msra.mxu0 0
    %862 = vmatprep.subr.bf16.mxu0 0
    %863 = vmatpush1.bf16.msra.mxu0 0
    %864 = vmatprep.subr.bf16.mxu0 0
    %865 = vmatpush1.bf16.msra.mxu0 0
    %866 = vmatprep.subr.bf16.mxu0 0
    %867 = vmatpush1.bf16.msra.mxu0 0
    %868 = vmatprep.subr.bf16.mxu0 0
    %869 = vmatpush1.bf16.msra.mxu0 0
    %870 = vmatprep.subr.bf16.mxu0 0
    %871 = vmatpush1.bf16.msra.mxu0 0
    %872 = vmatprep.subr.bf16.mxu0 0
    %873 = vmatpush1.bf16.msra.mxu0 0
    %874 = vmatprep.subr.bf16.mxu0 0
    %875 = vmatpush1.bf16.msra.mxu0 0
    %876 = vmatprep.subr.bf16.mxu0 0
    %877 = vmatpush1.bf16.msra.mxu0 0
    %878 = vmatprep.mubr.bf16.mxu0 0
    %879 = vmatmul.mubr.bf16.gmra.mrb[0].mxu0 %v841
    %v880 = vpop.f32.mrb[0].mxu0
    %v881 = vadd.f32 %v813, %v880
    %v882 = vpop.f32.mrb[0].mxu0
    %v883 = vpop.f32.mrb[0].mxu0
    %v884 = vadd.f32 %v813, %v883
    %v885 = vpop.f32.mrb[0].mxu0
    %886 = vmatprep.mubr.bf16.mxu0 0
    %887 = vmatmul.mubr.bf16.gmra.mrb[0].mxu0 %v844
    %v888 = vpop.f32.mrb[0].mxu0
    %v889 = vadd.f32 %v813, %v888
    %v890 = vpop.f32.mrb[0].mxu0
    %v891 = vpop.f32.mrb[0].mxu0
    %v892 = vadd.f32 %v813, %v891
    %v893 = vpop.f32.mrb[0].mxu0
    %894 = vdwg.mxu0
    %895 = vmatprep.subr.bf16.mxu0 0
    %896 = vmatpush1.bf16.msra.mxu0 %v479
    %897 = vmatprep.subr.bf16.mxu0 0
    %898 = vmatpush1.bf16.msra.mxu0 %v480
    %899 = vmatprep.subr.bf16.mxu0 0
    %900 = vmatpush1.bf16.msra.mxu0 %v481
    %901 = vmatprep.subr.bf16.mxu0 0
    %902 = vmatpush1.bf16.msra.mxu0 %v482
    %903 = vmatprep.subr.bf16.mxu0 0
    %904 = vmatpush1.bf16.msra.mxu0 %v483
    %905 = vmatprep.subr.bf16.mxu0 0
    %906 = vmatpush1.bf16.msra.mxu0 %v484
    %907 = vmatprep.subr.bf16.mxu0 0
    %908 = vmatpush1.bf16.msra.mxu0 %v485
    %909 = vmatprep.subr.bf16.mxu0 0
    %910 = vmatpush1.bf16.msra.mxu0 %v486
    %911 = vmatprep.subr.bf16.mxu0 0
    %912 = vmatpush1.bf16.msra.mxu0 %v487
    %913 = vmatprep.subr.bf16.mxu0 0
    %914 = vmatpush1.bf16.msra.mxu0 %v488
    %915 = vmatprep.subr.bf16.mxu0 0
    %916 = vmatpush1.bf16.msra.mxu0 %v489
    %917 = vmatprep.subr.bf16.mxu0 0
    %918 = vmatpush1.bf16.msra.mxu0 %v490
    %919 = vmatprep.subr.bf16.mxu0 0
    %920 = vmatpush1.bf16.msra.mxu0 %v491
    %921 = vmatprep.subr.bf16.mxu0 0
    %922 = vmatpush1.bf16.msra.mxu0 %v492
    %923 = vmatprep.subr.bf16.mxu0 0
    %924 = vmatpush1.bf16.msra.mxu0 %v493
    %925 = vmatprep.subr.bf16.mxu0 0
    %926 = vmatpush1.bf16.msra.mxu0 %v494
    %927 = vmatprep.mubr.bf16.mxu0 %v202
    %928 = vmatmul.mubr.bf16.gmra.mrb[0].mxu0 %v201
    %v929 = vpop.f32.mrb[0].mxu0
    %v930 = vadd.f32 %v221, %v929
    %v931 = vpop.f32.mrb[0].mxu0
    %v932 = vpop.f32.mrb[0].mxu0
    %v933 = vadd.f32 %v221, %v932
    %v934 = vpop.f32.mrb[0].mxu0
    %935 = vmatprep.mubr.bf16.mxu0 %v210
    %936 = vmatmul.mubr.bf16.gmra.mrb[0].mxu0 %v209
    %v937 = vpop.f32.mrb[0].mxu0
    %v938 = vadd.f32 %v221, %v937
    %v939 = vpop.f32.mrb[0].mxu0
    %v940 = vpop.f32.mrb[0].mxu0
    %v941 = vadd.f32 %v221, %v940
    %v942 = vpop.f32.mrb[0].mxu0
    %943 = vdwg.mxu0
    %944 = vmatprep.subr.bf16.mxu0 0
    %945 = vmatpush1.bf16.msra.mxu0 %v495
    %946 = vmatprep.subr.bf16.mxu0 0
    %947 = vmatpush1.bf16.msra.mxu0 %v496
    %948 = vmatprep.subr.bf16.mxu0 0
    %949 = vmatpush1.bf16.msra.mxu0 %v497
    %950 = vmatprep.subr.bf16.mxu0 0
    %951 = vmatpush1.bf16.msra.mxu0 %v498
    %952 = vmatprep.subr.bf16.mxu0 0
    %953 = vmatpush1.bf16.msra.mxu0 %v499
    %954 = vmatprep.subr.bf16.mxu0 0
    %955 = vmatpush1.bf16.msra.mxu0 %v500
    %956 = vmatprep.subr.bf16.mxu0 0
    %957 = vmatpush1.bf16.msra.mxu0 %v501
    %958 = vmatprep.subr.bf16.mxu0 0
    %959 = vmatpush1.bf16.msra.mxu0 %v502
    %960 = vmatprep.subr.bf16.mxu0 0
    %961 = vmatpush1.bf16.msra.mxu0 %v503
    %962 = vmatprep.subr.bf16.mxu0 0
    %963 = vmatpush1.bf16.msra.mxu0 %v504
    %964 = vmatprep.subr.bf16.mxu0 0
    %965 = vmatpush1.bf16.msra.mxu0 %v505
    %966 = vmatprep.subr.bf16.mxu0 0
    %967 = vmatpush1.bf16.msra.mxu0 %v506
    %968 = vmatprep.subr.bf16.mxu0 0
    %969 = vmatpush1.bf16.msra.mxu0 %v507
    %970 = vmatprep.subr.bf16.mxu0 0
    %971 = vmatpush1.bf16.msra.mxu0 %v508
    %972 = vmatprep.subr.bf16.mxu0 0
    %973 = vmatpush1.bf16.msra.mxu0 %v509
    %974 = vmatprep.subr.bf16.mxu0 0
    %975 = vmatpush1.bf16.msra.mxu0 %v510
    %976 = vmatprep.mubr.bf16.mxu0 %v204
    %977 = vmatmul.mubr.bf16.gmra.mrb[0].mxu0 %v203
    %v978 = vpop.f32.mrb[0].mxu0
    %v979 = vadd.f32 %v930, %v978
    %v980 = vpop.f32.mrb[0].mxu0
    %v981 = vpop.f32.mrb[0].mxu0
    %v982 = vadd.f32 %v933, %v981
    %v983 = vpop.f32.mrb[0].mxu0
    %984 = vmatprep.mubr.bf16.mxu0 %v212
    %985 = vmatmul.mubr.bf16.gmra.mrb[0].mxu0 %v211
    %v986 = vpop.f32.mrb[0].mxu0
    %v987 = vadd.f32 %v938, %v986
    %v988 = vpop.f32.mrb[0].mxu0
    %v989 = vpop.f32.mrb[0].mxu0
    %v990 = vadd.f32 %v941, %v989
    %v991 = vpop.f32.mrb[0].mxu0
    %992 = vdwg.mxu0
    %993 = vmatprep.subr.bf16.mxu0 0
    %994 = vmatpush1.bf16.msra.mxu0 %v511
    %995 = vmatprep.subr.bf16.mxu0 0
    %996 = vmatpush1.bf16.msra.mxu0 %v512
    %997 = vmatprep.subr.bf16.mxu0 0
    %998 = vmatpush1.bf16.msra.mxu0 %v513
    %999 = vmatprep.subr.bf16.mxu0 0
    %1000 = vmatpush1.bf16.msra.mxu0 %v514
    %1001 = vmatprep.subr.bf16.mxu0 0
    %1002 = vmatpush1.bf16.msra.mxu0 %v515
    %1003 = vmatprep.subr.bf16.mxu0 0
    %1004 = vmatpush1.bf16.msra.mxu0 %v516
    %1005 = vmatprep.subr.bf16.mxu0 0
    %1006 = vmatpush1.bf16.msra.mxu0 %v517
    %1007 = vmatprep.subr.bf16.mxu0 0
    %1008 = vmatpush1.bf16.msra.mxu0 %v518
    %1009 = vmatprep.subr.bf16.mxu0 0
    %1010 = vmatpush1.bf16.msra.mxu0 %v519
    %1011 = vmatprep.subr.bf16.mxu0 0
    %1012 = vmatpush1.bf16.msra.mxu0 %v520
    %1013 = vmatprep.subr.bf16.mxu0 0
    %1014 = vmatpush1.bf16.msra.mxu0 %v521
    %1015 = vmatprep.subr.bf16.mxu0 0
    %1016 = vmatpush1.bf16.msra.mxu0 %v522
    %1017 = vmatprep.subr.bf16.mxu0 0
    %1018 = vmatpush1.bf16.msra.mxu0 %v523
    %1019 = vmatprep.subr.bf16.mxu0 0
    %1020 = vmatpush1.bf16.msra.mxu0 %v524
    %1021 = vmatprep.subr.bf16.mxu0 0
    %1022 = vmatpush1.bf16.msra.mxu0 %v525
    %1023 = vmatprep.subr.bf16.mxu0 0
    %1024 = vmatpush1.bf16.msra.mxu0 %v526
    %1025 = vmatprep.mubr.bf16.mxu0 %v206
    %1026 = vmatmul.mubr.bf16.gmra.mrb[0].mxu0 %v205
    %v1027 = vpop.f32.mrb[0].mxu0
    %v1028 = vadd.f32 %v979, %v1027
    %v1029 = vpop.f32.mrb[0].mxu0
    %v1030 = vpop.f32.mrb[0].mxu0
    %v1031 = vadd.f32 %v982, %v1030
    %v1032 = vpop.f32.mrb[0].mxu0
    %1033 = vmatprep.mubr.bf16.mxu0 %v214
    %1034 = vmatmul.mubr.bf16.gmra.mrb[0].mxu0 %v213
    %v1035 = vpop.f32.mrb[0].mxu0
    %v1036 = vadd.f32 %v987, %v1035
    %v1037 = vpop.f32.mrb[0].mxu0
    %v1038 = vpop.f32.mrb[0].mxu0
    %v1039 = vadd.f32 %v990, %v1038
    %v1040 = vpop.f32.mrb[0].mxu0
    %1041 = vdwg.mxu0
    %1042 = vmatprep.subr.bf16.mxu0 0
    %1043 = vmatpush1.bf16.msra.mxu0 %v527
    %1044 = vmatprep.subr.bf16.mxu0 0
    %1045 = vmatpush1.bf16.msra.mxu0 %v528
    %1046 = vmatprep.subr.bf16.mxu0 0
    %1047 = vmatpush1.bf16.msra.mxu0 %v529
    %1048 = vmatprep.subr.bf16.mxu0 0
    %1049 = vmatpush1.bf16.msra.mxu0 %v530
    %1050 = vmatprep.subr.bf16.mxu0 0
    %1051 = vmatpush1.bf16.msra.mxu0 %v531
    %1052 = vmatprep.subr.bf16.mxu0 0
    %1053 = vmatpush1.bf16.msra.mxu0 %v532
    %1054 = vmatprep.subr.bf16.mxu0 0
    %1055 = vmatpush1.bf16.msra.mxu0 %v533
    %1056 = vmatprep.subr.bf16.mxu0 0
    %1057 = vmatpush1.bf16.msra.mxu0 %v534
    %1058 = vmatprep.subr.bf16.mxu0 0
    %1059 = vmatpush1.bf16.msra.mxu0 %v535
    %1060 = vmatprep.subr.bf16.mxu0 0
    %1061 = vmatpush1.bf16.msra.mxu0 %v536
    %1062 = vmatprep.subr.bf16.mxu0 0
    %1063 = vmatpush1.bf16.msra.mxu0 %v537
    %1064 = vmatprep.subr.bf16.mxu0 0
    %1065 = vmatpush1.bf16.msra.mxu0 %v538
    %1066 = vmatprep.subr.bf16.mxu0 0
    %1067 = vmatpush1.bf16.msra.mxu0 %v539
    %1068 = vmatprep.subr.bf16.mxu0 0
    %1069 = vmatpush1.bf16.msra.mxu0 %v540
    %1070 = vmatprep.subr.bf16.mxu0 0
    %1071 = vmatpush1.bf16.msra.mxu0 %v541
    %1072 = vmatprep.subr.bf16.mxu0 0
    %1073 = vmatpush1.bf16.msra.mxu0 %v542
    %1074 = vmatprep.mubr.bf16.mxu0 %v208
    %1075 = vmatmul.mubr.bf16.gmra.mrb[0].mxu0 %v207
    %v1076 = vpop.f32.mrb[0].mxu0
    %v1077 = vadd.f32 %v1028, %v1076
    %v1078 = vpop.f32.mrb[0].mxu0
    %v1079 = vpop.f32.mrb[0].mxu0
    %v1080 = vadd.f32 %v1031, %v1079
    %v1081 = vpop.f32.mrb[0].mxu0
    %1082 = vmatprep.mubr.bf16.mxu0 %v216
    %1083 = vmatmul.mubr.bf16.gmra.mrb[0].mxu0 %v215
    %v1084 = vpop.f32.mrb[0].mxu0
    %v1085 = vadd.f32 %v1036, %v1084
    %v1086 = vpop.f32.mrb[0].mxu0
    %v1087 = vpop.f32.mrb[0].mxu0
    %v1088 = vadd.f32 %v1039, %v1087
    %v1089 = vpop.f32.mrb[0].mxu0
    %1090 = vdwg.mxu0
    %v1091 = vmax.f32 %v1077, 0.0
    %v1092 = vmax.f32 %v1080, 0.0
    %v1093 = vmax.f32 %v1085, 0.0
    %v1094 = vmax.f32 %v1088, 0.0
    %v1095 = vpack.c.bf16 %v1092, %v1091
    %v1096 = vpack.c.bf16 %v1094, %v1093
    %v1098 = vsel %vm839, %v1095, 0
    %v1101 = vsel %vm839, %v1096, 0
    %1103 = vmatprep.subr.bf16.mxu0 0
    %1104 = vmatpush1.bf16.msra.mxu0 %v831
    %1105 = vmatprep.subr.bf16.mxu0 0
    %1106 = vmatpush1.bf16.msra.mxu0 %v832
    %1107 = vmatprep.subr.bf16.mxu0 0
    %1108 = vmatpush1.bf16.msra.mxu0 %v833
    %1109 = vmatprep.subr.bf16.mxu0 0
    %1110 = vmatpush1.bf16.msra.mxu0 %v834
    %1111 = vmatprep.subr.bf16.mxu0 0
    %1112 = vmatpush1.bf16.msra.mxu0 0
    %1113 = vmatprep.subr.bf16.mxu0 0
    %1114 = vmatpush1.bf16.msra.mxu0 0
    %1115 = vmatprep.subr.bf16.mxu0 0
    %1116 = vmatpush1.bf16.msra.mxu0 0
    %1117 = vmatprep.subr.bf16.mxu0 0
    %1118 = vmatpush1.bf16.msra.mxu0 0
    %1119 = vmatprep.subr.bf16.mxu0 0
    %1120 = vmatpush1.bf16.msra.mxu0 0
    %1121 = vmatprep.subr.bf16.mxu0 0
    %1122 = vmatpush1.bf16.msra.mxu0 0
    %1123 = vmatprep.subr.bf16.mxu0 0
    %1124 = vmatpush1.bf16.msra.mxu0 0
    %1125 = vmatprep.subr.bf16.mxu0 0
    %1126 = vmatpush1.bf16.msra.mxu0 0
    %1127 = vmatprep.subr.bf16.mxu0 0
    %1128 = vmatpush1.bf16.msra.mxu0 0
    %1129 = vmatprep.subr.bf16.mxu0 0
    %1130 = vmatpush1.bf16.msra.mxu0 0
    %1131 = vmatprep.subr.bf16.mxu0 0
    %1132 = vmatpush1.bf16.msra.mxu0 0
    %1133 = vmatprep.subr.bf16.mxu0 0
    %1134 = vmatpush1.bf16.msra.mxu0 0
    %1135 = vmatprep.mubr.bf16.mxu0 0
    %1136 = vmatmul.mubr.bf16.gmra.mrb[0].mxu0 %v1098
    %v1137 = vpop.f32.mrb[0].mxu0
    %v1138 = vadd.f32 %v813, %v1137
    %v1139 = vpop.f32.mrb[0].mxu0
    %v1140 = vpop.f32.mrb[0].mxu0
    %v1141 = vadd.f32 %v813, %v1140
    %v1142 = vpop.f32.mrb[0].mxu0
    %1143 = vmatprep.mubr.bf16.mxu0 0
    %1144 = vmatmul.mubr.bf16.gmra.mrb[0].mxu0 %v1101
    %v1145 = vpop.f32.mrb[0].mxu0
    %v1146 = vadd.f32 %v813, %v1145
    %v1147 = vpop.f32.mrb[0].mxu0
    %v1148 = vpop.f32.mrb[0].mxu0
    %v1149 = vadd.f32 %v813, %v1148
    %v1150 = vpop.f32.mrb[0].mxu0
    %1151 = vdwg.mxu0
    %v1152 = vld [vmem:[%s2] sm:$0xff]
    %v1153 = vld [vmem:[%s2 + $0x8] sm:$0xff]
    %v1154 = vld [vmem:[%s2 + $0x10] sm:$0xff]
    %v1155 = vld [vmem:[%s2 + $0x18] sm:$0xff]
    %v1156 = vmul.f32 %v881, %v1152
    %v1157 = vmul.f32 %v884, %v1153
    %v1158 = vmul.f32 %v889, %v1154
    %v1159 = vmul.f32 %v892, %v1155
    %vm1160 = vcmask 64512
    %v1161 = vsel %vm1160, %v1156, 0.0
    %1162 = vadd.xlane.f32.xlu0 %v1161
    %v1163 = vpop.xlane.xlu0 %1162
    %v1164 = vsel %vm1160, %v1157, 0.0
    %1165 = vadd.xlane.f32.xlu0 %v1164
    %v1166 = vpop.xlane.xlu0 %1165
    %v1167 = vsel %vm1160, %v1158, 0.0
    %1168 = vadd.xlane.f32.xlu0 %v1167
    %v1169 = vpop.xlane.xlu0 %1168
    %v1170 = vsel %vm1160, %v1159, 0.0
    %1171 = vadd.xlane.f32.xlu0 %v1170
    %v1172 = vpop.xlane.xlu0 %1171
    %v1173 = vlaneseq
    %v1174 = vand.u32 %v1173, 127
    %vm1175 = vcmp.ge.s32.totalorder %v1174, 4
    %v1176 = vsel %vm1175, %v1138, -1e+30
    %v1177 = vsel %vm1175, %v1141, -1e+30
    %v1178 = vsel %vm1175, %v1146, -1e+30
    %v1179 = vsel %vm1175, %v1149, -1e+30
    %v1180 = vsel %vm1160, %v1176, -inf
    %1181 = vmax.xlane.f32.xlu0 %v1180
    %v1182 = vpop.xlane.xlu0 %1181
    %v1183 = vsel %vm1160, %v1177, -inf
    %1184 = vmax.xlane.f32.xlu0 %v1183
    %v1185 = vpop.xlane.xlu0 %1184
    %v1186 = vsel %vm1160, %v1178, -inf
    %1187 = vmax.xlane.f32.xlu0 %v1186
    %v1188 = vpop.xlane.xlu0 %1187
    %v1189 = vsel %vm1160, %v1179, -inf
    %1190 = vmax.xlane.f32.xlu0 %v1189
    %v1191 = vpop.xlane.xlu0 %1190
    %v1192 = vld [vmem:[%s3] sm:$0xff]
    %v1193 = vld [vmem:[%s3 + $0x8] sm:$0xff]
    %v1194 = vld [vmem:[%s3 + $0x10] sm:$0xff]
    %v1195 = vld [vmem:[%s3 + $0x18] sm:$0xff]
    %v1196 = vmul.f32 %v1182, 0.9
    %v1197 = vmul.f32 %v1185, 0.9
    %v1198 = vmul.f32 %v1188, 0.9
    %v1199 = vmul.f32 %v1191, 0.9
    %v1200 = vsub.f32 1.0, %v1192
    %v1201 = vsub.f32 1.0, %v1193
    %v1202 = vsub.f32 1.0, %v1194
    %v1203 = vsub.f32 1.0, %v1195
    %v1204 = vmul.f32 %v1196, %v1200
    %v1205 = vmul.f32 %v1197, %v1201
    %v1206 = vmul.f32 %v1198, %v1202
    %v1207 = vmul.f32 %v1199, %v1203
    %1212 = vrot.lane.b32.xlu0 %v1204, 127
    %v1213 = vpop.permute.xlu0 %1212
    %1214 = vrot.lane.b32.xlu0 %v1205, 127
    %v1215 = vpop.permute.xlu0 %1214
    %1216 = vrot.lane.b32.xlu0 %v1206, 127
    %v1217 = vpop.permute.xlu0 %1216
    %1218 = vrot.lane.b32.xlu0 %v1207, 127
    %v1219 = vpop.permute.xlu0 %1218
    %v1224 = vadd.f32 %v1192, %v1213
    %v1225 = vadd.f32 %v1193, %v1215
    %v1226 = vadd.f32 %v1194, %v1217
    %v1227 = vadd.f32 %v1195, %v1219
    %v1228 = vsub.f32 %v1163, %v1224
    %v1229 = vsub.f32 %v1166, %v1225
    %v1230 = vsub.f32 %v1169, %v1226
    %v1231 = vsub.f32 %v1172, %v1227
    %v1232 = vand.u32 2147483647, %v1228
    %v1233 = vand.u32 2147483647, %v1229
    %v1234 = vand.u32 2147483647, %v1230
    %v1235 = vand.u32 2147483647, %v1231
    %vm1236 = vcmp.lt.f32.partialorder %v1232, 1.0
    %vm1237 = vcmp.lt.f32.partialorder %v1233, 1.0
    %vm1238 = vcmp.lt.f32.partialorder %v1234, 1.0
    %vm1239 = vcmp.lt.f32.partialorder %v1235, 1.0
    %v1240 = vmul.f32 %v1228, 0.5
    %v1241 = vmul.f32 %v1229, 0.5
    %v1242 = vmul.f32 %v1230, 0.5
    %v1243 = vmul.f32 %v1231, 0.5
    %v1244 = vmul.f32 %v1240, %v1228
    %v1245 = vmul.f32 %v1241, %v1229
    %v1246 = vmul.f32 %v1242, %v1230
    %v1247 = vmul.f32 %v1243, %v1231
    %v1248 = vsub.f32 %v1232, 0.5
    %v1249 = vsub.f32 %v1233, 0.5
    %v1250 = vsub.f32 %v1234, 0.5
    %v1251 = vsub.f32 %v1235, 0.5
    %v1252 = vsel %vm1236, %v1244, %v1248
    %v1253 = vsel %vm1237, %v1245, %v1249
    %v1254 = vsel %vm1238, %v1246, %v1250
    %v1255 = vsel %vm1239, %v1247, %v1251
    %vm1256 = vcmask 7168
    %v1257 = vsel %vm1256, %v1252, 0.0
    %v1258 = vsel %vm1256, %v1253, 0.0
    %v1259 = vadd.f32 %v1257, %v1258
    %v1260 = vsel %vm1256, %v1254, 0.0
    %v1261 = vadd.f32 %v1259, %v1260
    %v1262 = vsel %vm1256, %v1255, 0.0
    %v1263 = vadd.f32 %v1261, %v1262
    %1264 = vadd.xlane.f32.xlu0 %v1263
    %v1265 = vpop.xlane.xlu0 %1264
    %v1266 = vrot.slane %v1265, 4
    %v1267 = vadd.f32 %v1265, %v1266
    %v1268 = vrot.slane %v1267, 2
    %v1269 = vadd.f32 %v1267, %v1268
    %v1270 = vrot.slane %v1269, 1
    %v1271 = vadd.f32 %v1269, %v1270
    %s1272 = vtos %v1271
    %v1273 = vlaneseq
    %v1274 = vshrl.u32 %v1273, 7
    %vm1275 = vcmp.eq.s32.totalorder %v1274, 0
    %vm1276 = vcmp.eq.s32.totalorder %v1174, 0
    %vm1277 = vmand %vm1275, %vm1276
    %v1278 = vstv %s1272
    %v1279 = vsel %vm1277, %v1278, 0.0
    %1280 = vst [vmem:[#allocation2] sm:$0xff] %v1279
    // Predicated region
    $region34: #{tpu_custom_call.1} parent=1 // pred_check
      _
    $region35: #{tpu_custom_call.1} parent=1 // pred_check_branch
      %1282 = sbr.rel (0) target = $region37
    $region36: #{tpu_custom_call.1} parent=1 // pred_region
      %s1284 = ssub.s32 128, 128
      %1285 = vsyncadd [#allocation3], %s1284
      %s1287 = sshll.u32 [#allocation2], 4
      %s1288 = int_to_ptr.vmem [resolvable:$true] %s1287
      %1290 = dma.vmem_to_hbm [thread:$0]  %s1288, 128, %s8, [#allocation3]
    $region37: #{tpu_custom_call.1} parent=1 // pred_fallthru
      _
    // Predicated region
    $region38: #{tpu_custom_call.1} parent=1 // pred_check
      _
    $region39: #{tpu_custom_call.1} parent=1 // pred_check_branch
      %1292 = sbr.rel (0) target = $region41
    $region40: #{tpu_custom_call.1} parent=1 // pred_region
      %1293 = dma.done [#allocation3], 128
    $region41: #{tpu_custom_call.1} parent=1 // pred_fallthru
      _
    %1294 = vsyncpa [#allocation3], 1

</llo_original>
